<compile_context>
chip_gen: v6e
topology: v6e:2x2x1
jax: 0.10.0
libtpu: 0.0.40
codegen_flags: <defaults>
</compile_context>

<pallas_src>
import functools

import jax
import jax.numpy as jnp
from jax.experimental import pallas as pl
from jax.experimental.pallas import tpu as pltpu

_HIDDEN = 64
_MAX_TB = 2048                     # cap rows per grid step
_VMEM_X_BUDGET = 12 * 1024 * 1024  # budget for double-buffered f32 x tiles


def _round_up(x, m):
    return ((x + m - 1) // m) * m


def _softplus(x):
    # Numerically-stable softplus matching torch.nn.Softplus (beta=1):
    #   softplus(x) = log(1 + exp(x)) = max(x, 0) + log1p(exp(-|x|))
    return jnp.maximum(x, 0.0) + jnp.log1p(jnp.exp(-jnp.abs(x)))


def _qnet_kernel(x_ref, w1_ref, b1_ref, w2_ref, b2_ref, w3_ref, b3_ref, o_ref):
    # x_ref : [tb, obs]          f32   (cast to bf16 on the VPU, hidden by DMA)
    # w1_ref: [obs, 64]   bf16   b1_ref: [1, 64]         f32
    # w2_ref: [64, 64]    bf16   b2_ref: [1, 64]         f32
    # w3_ref: [64, n_act] bf16   b3_ref: [1, n_act]      f32
    # o_ref : [tb, n_act] f32    (narrow store; masked vst is cheap here)
    x = x_ref[...].astype(jnp.bfloat16)

    # bf16 MXU operands, f32 accumulation; bias/ReLU/softplus stay in f32.
    h1 = jnp.dot(x, w1_ref[...], preferred_element_type=jnp.float32) + b1_ref[...]
    h1 = jnp.maximum(h1, 0.0).astype(jnp.bfloat16)

    h2 = jnp.dot(h1, w2_ref[...], preferred_element_type=jnp.float32) + b2_ref[...]
    h2 = jnp.maximum(h2, 0.0).astype(jnp.bfloat16)

    h3 = jnp.dot(h2, w3_ref[...], preferred_element_type=jnp.float32) + b3_ref[...]
    o_ref[...] = _softplus(h3).astype(o_ref.dtype)


def _pick_tb(batch, obs):
    """Rows per grid step.

    Multiple of 16 (bf16 sublane packing), >=2 grid steps at scale so both
    v7x TensorCores get work, capped so double-buffered f32 x tiles stay well
    inside scoped VMEM even for large obs.
    """
    if batch <= 256:
        tb = _round_up(max(batch, 1), 16)
    else:
        # aim for >= 2 grid steps, 256-row aligned, capped at _MAX_TB
        tb = min(_MAX_TB, _round_up((batch + 1) // 2, 256))
    # VMEM cap: 2 buffers x tb x obs x 4 B (f32 x) must fit the budget.
    max_rows = max(16, (_VMEM_X_BUDGET // (max(obs, 1) * 8)) // 16 * 16)
    return min(tb, max_rows)


def prepare_params(params):
    """One-time packing of PyTorch-layout f32 params into kernel layout.

    params: dict with w1 [64, obs], b1 [64], w2 [64, 64], b2 [64],
            w3 [n_actions, 64], b3 [n_actions]   (PyTorch layout, f32)
    """
    hidden = params["w1"].shape[0]
    n_actions = params["w3"].shape[0]
    packed = {
        "w1": params["w1"].T.astype(jnp.bfloat16),            # [obs, 64]
        "b1": params["b1"].reshape(1, hidden).astype(jnp.float32),
        "w2": params["w2"].T.astype(jnp.bfloat16),             # [64, 64]
        "b2": params["b2"].reshape(1, hidden).astype(jnp.float32),
        "w3": params["w3"].T.astype(jnp.bfloat16),             # [64, n_actions]
        "b3": params["b3"].reshape(1, n_actions).astype(jnp.float32),
    }
    return jax.tree_util.tree_map(jnp.asarray, packed)


@functools.partial(jax.jit, static_argnames=("tb",))
def _qnet_forward_packed(x, packed, *, tb):
    B, obs = x.shape
    hidden = packed["w1"].shape[1]
    n_actions = packed["w3"].shape[1]
    assert hidden == _HIDDEN

    # Zero-pad the batch to a multiple of the tile (deterministic padded rows,
    # sliced off afterwards). At most tb-1 extra rows.
    padded_b = _round_up(B, tb)
    x_p = x if padded_b == B else jnp.pad(x, ((0, padded_b - B), (0, 0)))
    x_p = x_p.astype(jnp.float32)

    grid = (padded_b // tb,)

    out_padded = pl.pallas_call(
        _qnet_kernel,
        out_shape=jax.ShapeDtypeStruct((padded_b, n_actions), jnp.float32),
        grid_spec=pltpu.PrefetchScalarGridSpec(
            num_scalar_prefetch=0,
            grid=grid,
            in_specs=[
                pl.BlockSpec((tb, obs), lambda i: (i, 0)),             # x tile (streams)
                pl.BlockSpec((obs, hidden), lambda i: (0, 0)),         # w1 (resident)
                pl.BlockSpec((1, hidden), lambda i: (0, 0)),           # b1
                pl.BlockSpec((hidden, hidden), lambda i: (0, 0)),      # w2
                pl.BlockSpec((1, hidden), lambda i: (0, 0)),           # b2
                pl.BlockSpec((hidden, n_actions), lambda i: (0, 0)),   # w3 (narrow)
                pl.BlockSpec((1, n_actions), lambda i: (0, 0)),        # b3
            ],
            out_specs=pl.BlockSpec((tb, n_actions), lambda i: (i, 0)),  # narrow out
        ),
        compiler_params=pltpu.CompilerParams(
            dimension_semantics=("parallel",),
            vmem_limit_bytes=32 * 1024 * 1024,   # v5e default scoped cap is 16 MiB
        ),
        cost_estimate=pl.CostEstimate(
            flops=2 * padded_b * (obs * hidden + hidden * hidden + hidden * n_actions),
            transcendentals=2 * padded_b * n_actions,
            bytes_accessed=(padded_b * obs * 4                       # x read (f32)
                            + (obs * hidden + hidden * hidden
                               + hidden * n_actions) * 2             # bf16 weights
                            + (2 * hidden + n_actions) * 4           # biases
                            + padded_b * n_actions * 4),             # output write
        ),
    )(x_p, packed["w1"], packed["b1"], packed["w2"], packed["b2"],
      packed["w3"], packed["b3"])

    return out_padded[:B] if padded_b != B else out_padded


def qnet_forward(x, packed_params, *, tb=None):
    """Fused forward pass of Q_net on pre-packed params (see prepare_params)."""
    if tb is None:
        tb = _pick_tb(x.shape[0], x.shape[1])
    return _qnet_forward_packed(x, packed_params, tb=tb)


def init_params(key, obs_size, n_actions, hidden=_HIDDEN):
    """Deterministic parameter init (Kaiming-uniform-ish, like PyTorch Linear)."""
    ks = jax.random.split(key, 6)

    def lin_init(kw, kb, fan_in, fan_out):
        bound = 1.0 / jnp.sqrt(fan_in)
        w = jax.random.uniform(kw, (fan_out, fan_in), jnp.float32, -bound, bound)
        b = jax.random.uniform(kb, (fan_out,), jnp.float32, -bound, bound)
        return w, b

    w1, b1 = lin_init(ks[0], ks[1], obs_size, hidden)
    w2, b2 = lin_init(ks[2], ks[3], hidden, hidden)
    w3, b3 = lin_init(ks[4], ks[5], hidden, n_actions)
    return {"w1": w1, "b1": b1, "w2": w2, "b2": b2, "w3": w3, "b3": b3}


def qnet_reference(x, p):
    """Plain-JAX f32 reference identical to the PyTorch forward."""
    h = jnp.maximum(x @ p["w1"].T + p["b1"], 0.0)
    h = jnp.maximum(h @ p["w2"].T + p["b2"], 0.0)
    h = h @ p["w3"].T + p["b3"]
    return jnp.maximum(h, 0.0) + jnp.log1p(jnp.exp(-jnp.abs(h)))


if __name__ == "__main__":
    key = jax.random.PRNGKey(0)
    k_x, k_p = jax.random.split(key)

    batch = 8
    obs_size = 32
    n_actions = 8

    x = jax.random.normal(k_x, (batch, obs_size), jnp.float32)
    params = init_params(k_p, obs_size, n_actions)

    packed = prepare_params(params)          # one-time weight packing
    out = qnet_forward(x, packed)
    out = jax.block_until_ready(out)

    ref = qnet_reference(x, params)
    assert out.shape == (batch, n_actions)
    # bf16 MXU operands with f32 accumulation -> loosened tolerance vs f32 ref.
    assert jnp.allclose(out, ref, atol=3e-2, rtol=3e-2), (
        float(jnp.max(jnp.abs(out - ref))))

    print("KERNEL_OK")
</pallas_src>

<mosaic_0001>
module attributes {stable_mosaic.version = 11 : i64} {
  func.func @_qnet_kernel(%arg0: i32, %arg1: memref<16x32xf32, #tpu.memory_space<vmem>>, %arg2: memref<32x64xbf16, #tpu.memory_space<vmem>>, %arg3: memref<1x64xf32, #tpu.memory_space<vmem>>, %arg4: memref<64x64xbf16, #tpu.memory_space<vmem>>, %arg5: memref<1x64xf32, #tpu.memory_space<vmem>>, %arg6: memref<64x8xbf16, #tpu.memory_space<vmem>>, %arg7: memref<1x8xf32, #tpu.memory_space<vmem>>, %arg8: memref<16x8xf32, #tpu.memory_space<vmem>>) attributes {dimension_semantics = [#tpu.dimension_semantics<parallel>], iteration_bounds = array<i64: 1>, scalar_prefetch = 0 : i64, scratch_operands = 0 : i64, tpu.core_type = #tpu.core_type<tc>, window_params = [{transform_indices = @transform_0, window_bounds = array<i64: 16, 32>}, {pipeline_mode = #tpu.pipeline_mode<synchronous>, transform_indices = @transform_1, window_bounds = array<i64: 32, 64>}, {pipeline_mode = #tpu.pipeline_mode<synchronous>, transform_indices = @transform_2, window_bounds = array<i64: 1, 64>}, {pipeline_mode = #tpu.pipeline_mode<synchronous>, transform_indices = @transform_3, window_bounds = array<i64: 64, 64>}, {pipeline_mode = #tpu.pipeline_mode<synchronous>, transform_indices = @transform_4, window_bounds = array<i64: 1, 64>}, {pipeline_mode = #tpu.pipeline_mode<synchronous>, transform_indices = @transform_5, window_bounds = array<i64: 64, 8>}, {pipeline_mode = #tpu.pipeline_mode<synchronous>, transform_indices = @transform_6, window_bounds = array<i64: 1, 8>}, {transform_indices = @transform_7, window_bounds = array<i64: 16, 8>}]} {
    %c0 = arith.constant 0 : index
    %c0_0 = arith.constant 0 : index
    %0 = vector.load %arg1[%c0, %c0_0] : memref<16x32xf32, #tpu.memory_space<vmem>>, vector<16x32xf32>
    %1 = arith.truncf %0 : vector<16x32xf32> to vector<16x32xbf16>
    %c0_1 = arith.constant 0 : index
    %c0_2 = arith.constant 0 : index
    %2 = vector.load %arg2[%c0_1, %c0_2] : memref<32x64xbf16, #tpu.memory_space<vmem>>, vector<32x64xbf16>
    %cst = arith.constant dense<0.000000e+00> : vector<16x64xf32>
    %3 = tpu.matmul %1, %2, %cst {dimension_numbers = #tpu.dot_dimension_numbers<[1], [0], [0], [1], [0, 0, 1, 1], [], []>} : vector<16x32xbf16>, vector<32x64xbf16>, vector<16x64xf32> -> vector<16x64xf32>
    %c0_3 = arith.constant 0 : index
    %c0_4 = arith.constant 0 : index
    %4 = vector.load %arg3[%c0_3, %c0_4] : memref<1x64xf32, #tpu.memory_space<vmem>>, vector<1x64xf32>
    %5 = vector.broadcast %4 : vector<1x64xf32> to vector<16x64xf32>
    %6 = arith.addf %3, %5 : vector<16x64xf32>
    %cst_5 = arith.constant 0.000000e+00 : f32
    %7 = vector.broadcast %cst_5 : f32 to vector<16x64xf32>
    %8 = arith.maximumf %6, %7 : vector<16x64xf32>
    %9 = arith.truncf %8 : vector<16x64xf32> to vector<16x64xbf16>
    %c0_6 = arith.constant 0 : index
    %c0_7 = arith.constant 0 : index
    %10 = vector.load %arg4[%c0_6, %c0_7] : memref<64x64xbf16, #tpu.memory_space<vmem>>, vector<64x64xbf16>
    %cst_8 = arith.constant dense<0.000000e+00> : vector<16x64xf32>
    %11 = tpu.matmul %9, %10, %cst_8 {dimension_numbers = #tpu.dot_dimension_numbers<[1], [0], [0], [1], [0, 0, 1, 1], [], []>} : vector<16x64xbf16>, vector<64x64xbf16>, vector<16x64xf32> -> vector<16x64xf32>
    %c0_9 = arith.constant 0 : index
    %c0_10 = arith.constant 0 : index
    %12 = vector.load %arg5[%c0_9, %c0_10] : memref<1x64xf32, #tpu.memory_space<vmem>>, vector<1x64xf32>
    %13 = vector.broadcast %12 : vector<1x64xf32> to vector<16x64xf32>
    %14 = arith.addf %11, %13 : vector<16x64xf32>
    %cst_11 = arith.constant 0.000000e+00 : f32
    %15 = vector.broadcast %cst_11 : f32 to vector<16x64xf32>
    %16 = arith.maximumf %14, %15 : vector<16x64xf32>
    %17 = arith.truncf %16 : vector<16x64xf32> to vector<16x64xbf16>
    %c0_12 = arith.constant 0 : index
    %c0_13 = arith.constant 0 : index
    %18 = vector.load %arg6[%c0_12, %c0_13] : memref<64x8xbf16, #tpu.memory_space<vmem>>, vector<64x8xbf16>
    %cst_14 = arith.constant dense<0.000000e+00> : vector<16x8xf32>
    %19 = tpu.matmul %17, %18, %cst_14 {dimension_numbers = #tpu.dot_dimension_numbers<[1], [0], [0], [1], [0, 0, 1, 1], [], []>} : vector<16x64xbf16>, vector<64x8xbf16>, vector<16x8xf32> -> vector<16x8xf32>
    %c0_15 = arith.constant 0 : index
    %c0_16 = arith.constant 0 : index
    %20 = vector.load %arg7[%c0_15, %c0_16] : memref<1x8xf32, #tpu.memory_space<vmem>>, vector<1x8xf32>
    %21 = vector.broadcast %20 : vector<1x8xf32> to vector<16x8xf32>
    %22 = arith.addf %19, %21 : vector<16x8xf32>
    %cst_17 = arith.constant 0.000000e+00 : f32
    %23 = vector.broadcast %cst_17 : f32 to vector<16x8xf32>
    %24 = arith.maximumf %22, %23 : vector<16x8xf32>
    %25 = math.absf %22 : vector<16x8xf32>
    %cst_18 = arith.constant 0.000000e+00 : f32
    %26 = vector.broadcast %cst_18 : f32 to vector<16x8xf32>
    %27 = arith.subf %26, %25 : vector<16x8xf32>
    %28 = math.exp %27 : vector<16x8xf32>
    %29 = math.log1p %28 : vector<16x8xf32>
    %30 = arith.addf %24, %29 : vector<16x8xf32>
    %c0_19 = arith.constant 0 : index
    %c0_20 = arith.constant 0 : index
    %31 = vector.load %arg8[%c0_19, %c0_20] : memref<16x8xf32, #tpu.memory_space<vmem>>, vector<16x8xf32>
    tpu.vector_store %arg8[%c0_19, %c0_20], %30 {strides = array<i32>} : memref<16x8xf32, #tpu.memory_space<vmem>>, vector<16x8xf32>,
    return
  }
  func.func @transform_0(%arg0: i32) -> (i32, i32) {
    %c0_i32 = arith.constant 0 : i32
    %c0_i32_0 = arith.constant 0 : i32
    return %arg0, %c0_i32 : i32, i32
  }
  func.func @transform_1(%arg0: i32) -> (i32, i32) {
    %c0_i32 = arith.constant 0 : i32
    %c0_i32_0 = arith.constant 0 : i32
    %c0_i32_1 = arith.constant 0 : i32
    return %c0_i32, %c0_i32_0 : i32, i32
  }
  func.func @transform_2(%arg0: i32) -> (i32, i32) {
    %c0_i32 = arith.constant 0 : i32
    %c0_i32_0 = arith.constant 0 : i32
    %c0_i32_1 = arith.constant 0 : i32
    return %c0_i32, %c0_i32_0 : i32, i32
  }
  func.func @transform_3(%arg0: i32) -> (i32, i32) {
    %c0_i32 = arith.constant 0 : i32
    %c0_i32_0 = arith.constant 0 : i32
    %c0_i32_1 = arith.constant 0 : i32
    return %c0_i32, %c0_i32_0 : i32, i32
  }
  func.func @transform_4(%arg0: i32) -> (i32, i32) {
    %c0_i32 = arith.constant 0 : i32
    %c0_i32_0 = arith.constant 0 : i32
    %c0_i32_1 = arith.constant 0 : i32
    return %c0_i32, %c0_i32_0 : i32, i32
  }
  func.func @transform_5(%arg0: i32) -> (i32, i32) {
    %c0_i32 = arith.constant 0 : i32
    %c0_i32_0 = arith.constant 0 : i32
    %c0_i32_1 = arith.constant 0 : i32
    return %c0_i32, %c0_i32_0 : i32, i32
  }
  func.func @transform_6(%arg0: i32) -> (i32, i32) {
    %c0_i32 = arith.constant 0 : i32
    %c0_i32_0 = arith.constant 0 : i32
    %c0_i32_1 = arith.constant 0 : i32
    return %c0_i32, %c0_i32_0 : i32, i32
  }
  func.func @transform_7(%arg0: i32) -> (i32, i32) {
    %c0_i32 = arith.constant 0 : i32
    %c0_i32_0 = arith.constant 0 : i32
    return %arg0, %c0_i32 : i32, i32
  }
}

</mosaic_0001>

<llo_original>
// kernel: _qnet_forward_packed.1
$region0: #{_qnet_forward_packed.1}
  #allocation0 [shape = 'u32[]', space=smem, size = 0x4, offset = 0x4, fixed_abs, tag = 'smem constant byte address 0x4 - core index']
  #allocation1 [shape = 'u32[144,128]{1,0:T(1,128)}', space=vmem, size = 0x12000, scoped, tag = 'internal scratch']
  %s0 = inlined_call_operand.vmem [shape: f32[16,32], index: 0, kind: input, shape index: {}]
  %s1 = inlined_call_operand.vmem [shape: bf16[32,64], index: 1, kind: input, shape index: {}]
  %s2 = inlined_call_operand.vmem [shape: f32[1,64], index: 2, kind: input, shape index: {}]
  %s3 = inlined_call_operand.vmem [shape: bf16[64,64], index: 3, kind: input, shape index: {}]
  %s4 = inlined_call_operand.vmem [shape: f32[1,64], index: 4, kind: input, shape index: {}]
  %s5 = inlined_call_operand.vmem [shape: bf16[64,8], index: 5, kind: input, shape index: {}]
  %s6 = inlined_call_operand.vmem [shape: f32[1,8], index: 6, kind: input, shape index: {}]
  %s7 = inlined_call_operand.vmem [shape: f32[16,8], index: 7, kind: output, shape index: {}]
  %s8 = sld [smem:[#allocation0]]
  $region38: #{_qnet_forward_packed.1} parent=0
    _
  %s10 = ssub.s32 1, %s8
  %s11 = scalar_select 0, %s10, %s8
  // Predicated region
  $region2: #{_qnet_forward_packed.1} parent=0 // pred_check
    _
  $region3: #{_qnet_forward_packed.1} parent=0 // pred_check_branch
    %13 = sbr.rel (0) target = $region5
  $region4: #{_qnet_forward_packed.1} parent=0 // pred_region
    _
  $region5: #{_qnet_forward_packed.1} parent=0 // pred_fallthru
    _
  // Predicated region
  $region6: #{_qnet_forward_packed.1} parent=0 // pred_check
    _
  $region7: #{_qnet_forward_packed.1} parent=0 // pred_check_branch
    %15 = sbr.rel (0) target = $region9
  $region8: #{_qnet_forward_packed.1} parent=0 // pred_region
    _
  $region9: #{_qnet_forward_packed.1} parent=0 // pred_fallthru
    _
  // Predicated region
  $region10: #{_qnet_forward_packed.1} parent=0 // pred_check
    _
  $region11: #{_qnet_forward_packed.1} parent=0 // pred_check_branch
    %17 = sbr.rel (0) target = $region13
  $region12: #{_qnet_forward_packed.1} parent=0 // pred_region
    _
  $region13: #{_qnet_forward_packed.1} parent=0 // pred_fallthru
    _
  // Predicated region
  $region14: #{_qnet_forward_packed.1} parent=0 // pred_check
    _
  $region15: #{_qnet_forward_packed.1} parent=0 // pred_check_branch
    %19 = sbr.rel (0) target = $region17
  $region16: #{_qnet_forward_packed.1} parent=0 // pred_region
    _
  $region17: #{_qnet_forward_packed.1} parent=0 // pred_fallthru
    _
  // Predicated region
  $region18: #{_qnet_forward_packed.1} parent=0 // pred_check
    _
  $region19: #{_qnet_forward_packed.1} parent=0 // pred_check_branch
    %21 = sbr.rel (0) target = $region21
  $region20: #{_qnet_forward_packed.1} parent=0 // pred_region
    _
  $region21: #{_qnet_forward_packed.1} parent=0 // pred_fallthru
    _
  // Predicated region
  $region22: #{_qnet_forward_packed.1} parent=0 // pred_check
    _
  $region23: #{_qnet_forward_packed.1} parent=0 // pred_check_branch
    %23 = sbr.rel (0) target = $region25
  $region24: #{_qnet_forward_packed.1} parent=0 // pred_region
    _
  $region25: #{_qnet_forward_packed.1} parent=0 // pred_fallthru
    _
  // Predicated region
  $region26: #{_qnet_forward_packed.1} parent=0 // pred_check
    _
  $region27: #{_qnet_forward_packed.1} parent=0 // pred_check_branch
    %25 = sbr.rel (0) target = $region29
  $region28: #{_qnet_forward_packed.1} parent=0 // pred_region
    _
  $region29: #{_qnet_forward_packed.1} parent=0 // pred_fallthru
    _
  %v27 = vld [vmem:[%s0] sm:$0xff]
  %v28 = vld [vmem:[%s0 + $0x8] sm:$0xff]
  %v29 = vpack.c.bf16 %v28, %v27
  %v30 = vld [vmem:[%s1] sm:$0xf]
  %v31 = vld [vmem:[%s1 + $0x4] sm:$0xf]
  %v32 = vld [vmem:[%s1 + $0x8] sm:$0xf]
  %v33 = vld [vmem:[%s1 + $0xc] sm:$0xf]
  %v34 = vld [vmem:[%s2] sm:$0x1]
  %v36 = vlaneseq
  %v37 = vshrl.u32 %v36, 7
  %v38 = vsub.s32 0, %v37
  %v39 = vrot.slane %v34, %v38
  %v45 = vunpack.c.l.b16 %v30
  %v46 = vunpack.c.l.b16 %v31
  %v47 = vunpack.c.l.b16 %v32
  %v48 = vunpack.c.l.b16 %v33
  %v49 = vpack.c.b16 %v46, %v45
  %v50 = vpack.c.b16 %v48, %v47
  %vm53 = vcmask 261120
  %v55 = vsel %vm53, %v29, 0
  %57 = vmatprep.subr.bf16.mxu0 0
  %58 = vmatpush1.bf16.msra.mxu0 0
  %59 = vmatprep.subr.bf16.mxu0 0
  %60 = vmatpush1.bf16.msra.mxu0 0
  %61 = vmatprep.subr.bf16.mxu0 0
  %62 = vmatpush1.bf16.msra.mxu0 0
  %63 = vmatprep.subr.bf16.mxu0 0
  %64 = vmatpush1.bf16.msra.mxu0 0
  %65 = vmatprep.subr.bf16.mxu0 0
  %66 = vmatpush1.bf16.msra.mxu0 0
  %67 = vmatprep.subr.bf16.mxu0 0
  %68 = vmatpush1.bf16.msra.mxu0 0
  %69 = vmatprep.subr.bf16.mxu0 0
  %70 = vmatpush1.bf16.msra.mxu0 %v50
  %71 = vmatprep.subr.bf16.mxu0 0
  %72 = vmatpush1.bf16.msra.mxu0 %v49
  %73 = vmatprep.subr.bf16.mxu0 0
  %74 = vmatpush2.bf16.msra.mxu0 0
  %75 = vmatprep.subr.bf16.mxu0 0
  %76 = vmatpush2.bf16.msra.mxu0 0
  %77 = vmatprep.subr.bf16.mxu0 0
  %78 = vmatpush2.bf16.msra.mxu0 0
  %79 = vmatprep.subr.bf16.mxu0 0
  %80 = vmatpush2.bf16.msra.mxu0 0
  %81 = vmatprep.subr.bf16.mxu0 0
  %82 = vmatpush2.bf16.msra.mxu0 0
  %83 = vmatprep.subr.bf16.mxu0 0
  %84 = vmatpush2.bf16.msra.mxu0 0
  %85 = vmatprep.subr.bf16.mxu0 0
  %86 = vmatpush2.bf16.msra.mxu0 0
  %87 = vmatprep.subr.bf16.mxu0 0
  %88 = vmatpush2.bf16.msra.mxu0 0
  %89 = vmatprep.mubr.bf16.mxu0 0
  %90 = vmatmul.mubr.bf16.gmra.mxu0 %v55
  %v91 = vpop.f32.mrf.mxu0
  %v92 = vadd.f32 %v39, %v91
  %v93 = vpop.f32.mrf.mxu0
  %v94 = vpop.f32.mrf.mxu0
  %v95 = vadd.f32 %v39, %v94
  %v96 = vpop.f32.mrf.mxu0
  %97 = vdwg.mxu0
  %v98 = vmax.f32 %v92, 0.0
  %v99 = vmax.f32 %v95, 0.0
  %v100 = vpack.c.bf16 %v99, %v98
  %v101 = vld [vmem:[%s3] sm:$0xf]
  %v102 = vld [vmem:[%s3 + $0x4] sm:$0xf]
  %v103 = vld [vmem:[%s3 + $0x8] sm:$0xf]
  %v104 = vld [vmem:[%s3 + $0xc] sm:$0xf]
  %v105 = vld [vmem:[%s3 + $0x10] sm:$0xf]
  %v106 = vld [vmem:[%s3 + $0x14] sm:$0xf]
  %v107 = vld [vmem:[%s3 + $0x18] sm:$0xf]
  %v108 = vld [vmem:[%s3 + $0x1c] sm:$0xf]
  %v109 = vld [vmem:[%s4] sm:$0x1]
  %v111 = vlaneseq
  %v112 = vshrl.u32 %v111, 7
  %v113 = vsub.s32 0, %v112
  %v114 = vrot.slane %v109, %v113
  %v124 = vunpack.c.l.b16 %v101
  %v125 = vunpack.c.l.b16 %v102
  %v126 = vunpack.c.l.b16 %v103
  %v127 = vunpack.c.l.b16 %v104
  %v128 = vunpack.c.l.b16 %v105
  %v129 = vunpack.c.l.b16 %v106
  %v130 = vunpack.c.l.b16 %v107
  %v131 = vunpack.c.l.b16 %v108
  %v132 = vpack.c.b16 %v125, %v124
  %v133 = vpack.c.b16 %v127, %v126
  %v134 = vpack.c.b16 %v129, %v128
  %v135 = vpack.c.b16 %v131, %v130
  %vm140 = vcmask 523264
  %v142 = vsel %vm140, %v100, 0
  %144 = vmatprep.subr.bf16.mxu0 0
  %145 = vmatpush1.bf16.msra.mxu0 0
  %146 = vmatprep.subr.bf16.mxu0 0
  %147 = vmatpush1.bf16.msra.mxu0 0
  %148 = vmatprep.subr.bf16.mxu0 0
  %149 = vmatpush1.bf16.msra.mxu0 0
  %150 = vmatprep.subr.bf16.mxu0 0
  %151 = vmatpush1.bf16.msra.mxu0 0
  %152 = vmatprep.subr.bf16.mxu0 0
  %153 = vmatpush1.bf16.msra.mxu0 %v135
  %154 = vmatprep.subr.bf16.mxu0 0
  %155 = vmatpush1.bf16.msra.mxu0 %v134
  %156 = vmatprep.subr.bf16.mxu0 0
  %157 = vmatpush1.bf16.msra.mxu0 %v133
  %158 = vmatprep.subr.bf16.mxu0 0
  %159 = vmatpush1.bf16.msra.mxu0 %v132
  %160 = vmatprep.subr.bf16.mxu0 0
  %161 = vmatpush2.bf16.msra.mxu0 0
  %162 = vmatprep.subr.bf16.mxu0 0
  %163 = vmatpush2.bf16.msra.mxu0 0
  %164 = vmatprep.subr.bf16.mxu0 0
  %165 = vmatpush2.bf16.msra.mxu0 0
  %166 = vmatprep.subr.bf16.mxu0 0
  %167 = vmatpush2.bf16.msra.mxu0 0
  %168 = vmatprep.subr.bf16.mxu0 0
  %169 = vmatpush2.bf16.msra.mxu0 0
  %170 = vmatprep.subr.bf16.mxu0 0
  %171 = vmatpush2.bf16.msra.mxu0 0
  %172 = vmatprep.subr.bf16.mxu0 0
  %173 = vmatpush2.bf16.msra.mxu0 0
  %174 = vmatprep.subr.bf16.mxu0 0
  %175 = vmatpush2.bf16.msra.mxu0 0
  %176 = vmatprep.mubr.bf16.mxu0 0
  %177 = vmatmul.mubr.bf16.gmra.mxu0 %v142
  %v178 = vpop.f32.mrf.mxu0
  %v179 = vadd.f32 %v114, %v178
  %v180 = vpop.f32.mrf.mxu0
  %v181 = vpop.f32.mrf.mxu0
  %v182 = vadd.f32 %v114, %v181
  %v183 = vpop.f32.mrf.mxu0
  %184 = vdwg.mxu0
  %v185 = vmax.f32 %v179, 0.0
  %v186 = vmax.f32 %v182, 0.0
  %v187 = vpack.c.bf16 %v186, %v185
  %v188 = vld [vmem:[%s5] sm:$0xf]
  %v189 = vld [vmem:[%s5 + $0x4] sm:$0xf]
  %v190 = vld [vmem:[%s5 + $0x8] sm:$0xf]
  %v191 = vld [vmem:[%s5 + $0xc] sm:$0xf]
  %v192 = vld [vmem:[%s5 + $0x10] sm:$0xf]
  %v193 = vld [vmem:[%s5 + $0x14] sm:$0xf]
  %v194 = vld [vmem:[%s5 + $0x18] sm:$0xf]
  %v195 = vld [vmem:[%s5 + $0x1c] sm:$0xf]
  %v196 = vld [vmem:[%s6] sm:$0x1]
  %v198 = vlaneseq
  %v199 = vshrl.u32 %v198, 7
  %v200 = vsub.s32 0, %v199
  %v201 = vrot.slane %v196, %v200
  %v211 = vunpack.c.l.b16 %v188
  %v212 = vunpack.c.l.b16 %v189
  %v213 = vunpack.c.l.b16 %v190
  %v214 = vunpack.c.l.b16 %v191
  %v215 = vunpack.c.l.b16 %v192
  %v216 = vunpack.c.l.b16 %v193
  %v217 = vunpack.c.l.b16 %v194
  %v218 = vunpack.c.l.b16 %v195
  %v219 = vpack.c.b16 %v212, %v211
  %v220 = vpack.c.b16 %v214, %v213
  %v221 = vpack.c.b16 %v216, %v215
  %v222 = vpack.c.b16 %v218, %v217
  %v228 = vsel %vm140, %v187, 0
  %230 = vmatprep.subr.bf16.mxu0 0
  %231 = vmatpush1.bf16.msra.mxu0 0
  %232 = vmatprep.subr.bf16.mxu0 0
  %233 = vmatpush1.bf16.msra.mxu0 0
  %234 = vmatprep.subr.bf16.mxu0 0
  %235 = vmatpush1.bf16.msra.mxu0 0
  %236 = vmatprep.subr.bf16.mxu0 0
  %237 = vmatpush1.bf16.msra.mxu0 0
  %238 = vmatprep.subr.bf16.mxu0 0
  %239 = vmatpush1.bf16.msra.mxu0 %v222
  %240 = vmatprep.subr.bf16.mxu0 0
  %241 = vmatpush1.bf16.msra.mxu0 %v221
  %242 = vmatprep.subr.bf16.mxu0 0
  %243 = vmatpush1.bf16.msra.mxu0 %v220
  %244 = vmatprep.subr.bf16.mxu0 0
  %245 = vmatpush1.bf16.msra.mxu0 %v219
  %246 = vmatprep.subr.bf16.mxu0 0
  %247 = vmatpush2.bf16.msra.mxu0 0
  %248 = vmatprep.subr.bf16.mxu0 0
  %249 = vmatpush2.bf16.msra.mxu0 0
  %250 = vmatprep.subr.bf16.mxu0 0
  %251 = vmatpush2.bf16.msra.mxu0 0
  %252 = vmatprep.subr.bf16.mxu0 0
  %253 = vmatpush2.bf16.msra.mxu0 0
  %254 = vmatprep.subr.bf16.mxu0 0
  %255 = vmatpush2.bf16.msra.mxu0 0
  %256 = vmatprep.subr.bf16.mxu0 0
  %257 = vmatpush2.bf16.msra.mxu0 0
  %258 = vmatprep.subr.bf16.mxu0 0
  %259 = vmatpush2.bf16.msra.mxu0 0
  %260 = vmatprep.subr.bf16.mxu0 0
  %261 = vmatpush2.bf16.msra.mxu0 0
  %262 = vmatprep.mubr.bf16.mxu0 0
  %263 = vmatmul.mubr.bf16.gmra.mxu0 %v228
  %v264 = vpop.f32.mrf.mxu0
  %v265 = vadd.f32 %v201, %v264
  %v266 = vpop.f32.mrf.mxu0
  %v267 = vpop.f32.mrf.mxu0
  %v268 = vadd.f32 %v201, %v267
  %v269 = vpop.f32.mrf.mxu0
  %270 = vdwg.mxu0
  %v271 = vmax.f32 %v265, 0.0
  %v272 = vmax.f32 %v268, 0.0
  %v273 = vand.u32 2147483647, %v265
  %v274 = vand.u32 2147483647, %v268
  %v275 = vsub.f32 0.0, %v273
  %v276 = vsub.f32 0.0, %v274
  %v277 = vmul.f32 %v275, 1.442695
  %v278 = vpow.pop %v277
  %v279 = vmul.f32 %v276, 1.442695
  %v280 = vpow.pop %v279
  %v281 = vadd.f32 %v278, 1.0
  %v282 = vlog2.pop %v281
  %v283 = vmul.f32 %v282, 0.6931472
  %v284 = vmul.f32 -0.5, %v278
  %v285 = vadd.f32 %v284, 1.0
  %v286 = vmul.f32 %v285, %v278
  %v287 = vand.u32 2147483647, %v278
  %vm288 = vcmp.lt.f32.partialorder %v287, 0.0004427343
  %v289 = vsel %vm288, %v286, %v283
  %v290 = vadd.f32 %v280, 1.0
  %v291 = vlog2.pop %v290
  %v292 = vmul.f32 %v291, 0.6931472
  %v293 = vmul.f32 -0.5, %v280
  %v294 = vadd.f32 %v293, 1.0
  %v295 = vmul.f32 %v294, %v280
  %v296 = vand.u32 2147483647, %v280
  %vm297 = vcmp.lt.f32.partialorder %v296, 0.0004427343
  %v298 = vsel %vm297, %v295, %v292
  %v299 = vadd.f32 %v271, %v289
  %v300 = vadd.f32 %v272, %v298
  %vm301 = vcmask 64512
  %302 = vst.msk [vmem:[%s7] sm:$0xff] %vm301, %v299
  %303 = vst.msk [vmem:[%s7 + $0x8] sm:$0xff] %vm301, %v300
  // Predicated region
  $region30: #{_qnet_forward_packed.1} parent=0 // pred_check
    _
  $region31: #{_qnet_forward_packed.1} parent=0 // pred_check_branch
    %305 = sbr.rel (0) target = $region33
  $region32: #{_qnet_forward_packed.1} parent=0 // pred_region
    _
  $region33: #{_qnet_forward_packed.1} parent=0 // pred_fallthru
    _
  // Predicated region
  $region34: #{_qnet_forward_packed.1} parent=0 // pred_check
    _
  $region35: #{_qnet_forward_packed.1} parent=0 // pred_check_branch
    %307 = sbr.rel (0) target = $region37
  $region36: #{_qnet_forward_packed.1} parent=0 // pred_region
    _
  $region37: #{_qnet_forward_packed.1} parent=0 // pred_fallthru
    _

</llo_original>
